<compile_context>
chip_gen: v7x
topology: tpu7x:2x2x1
jax: 0.10.0
libtpu: 0.0.40
codegen_flags: <defaults>
</compile_context>

<pallas_src>
import functools
import math

import jax
import jax.numpy as jnp
from jax.experimental import pallas as pl
from jax.experimental.pallas import tpu as pltpu

LANE = 128
SUBLANE = 8
LEAKY_SLOPE = 0.2


# ----------------------------------------------------------------------------- utils
def _ceil_to(x, m):
    return (x + m - 1) // m * m


def _pad_to(a, axis, target):
    pad = target - a.shape[axis]
    if pad <= 0:
        return a
    cfg = [(0, 0)] * a.ndim
    cfg[axis] = (0, pad)
    return jnp.pad(a, cfg)


def _fit_to(a, axis, target):
    if a.shape[axis] > target:
        idx = [slice(None)] * a.ndim
        idx[axis] = slice(0, target)
        return a[tuple(idx)]
    return _pad_to(a, axis, target)


def _leaky(x, slope=LEAKY_SLOPE):
    return jnp.where(x >= 0, x, x * slope)


def _upsample2x(x):
    # TODO(synk): nn.Upsample(scale_factor=2, mode='bilinear') kept as plain-JAX glue
    # (jax.image.resize 'bilinear' uses the same half-pixel / align_corners=False rule).
    B, H, W, C = x.shape
    return jax.image.resize(x, (B, 2 * H, 2 * W, C), method="bilinear")


# --------------------------------------------------------------------------- kernels
def _mapping_kernel(z_ref, w_ref, b_ref, o_ref, *, num_layers, d_in, eps, slope):
    """Fused PixelNorm + num_layers x (equalized-LR linear + bias + LeakyReLU)."""
    x = z_ref[...]
    # PixelNorm over the real feature dim (padded lanes are zero, so the sum is exact).
    ms = jnp.sum(x * x, axis=-1, keepdims=True) * (1.0 / d_in)
    x = x * jax.lax.rsqrt(ms + eps)
    for l in range(num_layers):                      # weights resident in VMEM, unrolled
        y = jnp.dot(x, w_ref[l], preferred_element_type=jnp.float32) + b_ref[l]
        x = jnp.where(y >= 0, y, y * slope)
    o_ref[...] = x.astype(o_ref.dtype)


def _affine_kernel(x_ref, w_ref, b_ref, o_ref):
    """WSLinear: y = x @ w_eff + b_eff (all gains pre-folded into w_eff/b_eff)."""
    y = jnp.dot(x_ref[...], w_ref[...], preferred_element_type=jnp.float32) + b_ref[...]
    o_ref[...] = y.astype(o_ref.dtype)


def _modconv_kernel(x_ref, w_ref, cin_ref, cout_ref, b_ref, *rest,
                    KH, KW, Wp, Qp, act_slope, has_noise):
    """Modulated (optionally demodulated) conv for one batch element.

    x_ref   : (1, Hp*Wp + pad, Cp)  flattened zero-padded NHWC slab
    w_ref   : (KH*KW, Cp, OCp)      base weight (scale / inf-norm already folded)
    cin_ref : (1, Cp, 1)            per-input-channel style modulation * scale
    cout_ref: (1, 1, OCp)           per-output-channel 1/demod (or ones)
    b_ref   : (1, 1, OCp)           bias
    rest    : [noise (1, Qp, OCp)], out (1, Qp, OCp)
    """
    if has_noise:
        n_ref, o_ref = rest
    else:
        (o_ref,) = rest
    ocp = o_ref.shape[-1]
    cin = cin_ref[0]                                   # (Cp, 1)
    acc = jnp.zeros((Qp, ocp), jnp.float32)
    for kh in range(KH):                               # in-kernel im2col:
        for kw in range(KW):                           # KH*KW shifted MXU matmuls
            wtap = w_ref[kh * KW + kw] * cin           # modulated tap (Cp, OCp)
            d = kh * Wp + kw
            acc = acc + jnp.dot(x_ref[0, d:d + Qp, :], wtap,
                                preferred_element_type=jnp.float32)
    y = acc * cout_ref[0] + b_ref[0]                   # demodulation + bias
    if has_noise:
        y = y + n_ref[0]                               # noise * noise_strength (pre-scaled)
    if act_slope is not None:
        y = jnp.where(y >= 0, y, y * act_slope)        # fused LeakyReLU
    o_ref[0] = y.astype(o_ref.dtype)


# -------------------------------------------------------------------------- wrappers
def mapping_forward(z, weights, biases, *, lr_scaler, eps=1e-8):
    """Mapping_network.forward (PixelNorm + 8x WSLinear + LeakyReLU), fused."""
    B, D = z.shape
    L = len(weights)
    Dp = _ceil_to(D, LANE)
    Bp = _ceil_to(max(B, SUBLANE), SUBLANE)
    wg = lr_scaler / math.sqrt(D)
    # Fold the equalized-LR gains into the tiny resident weights/biases once.
    w_stack = jnp.stack([_pad_to(_pad_to((w * wg).T, 0, Dp), 1, Dp) for w in weights])
    b_stack = jnp.stack(
        [_pad_to((b * lr_scaler).reshape(1, -1), 1, Dp) for b in biases])
    zp = _pad_to(_pad_to(z, 1, Dp), 0, Bp)
    out = pl.pallas_call(
        functools.partial(_mapping_kernel, num_layers=L, d_in=D, eps=eps,
                          slope=LEAKY_SLOPE),
        out_shape=jax.ShapeDtypeStruct((Bp, Dp), jnp.float32),
        grid_spec=pltpu.PrefetchScalarGridSpec(
            num_scalar_prefetch=0,
            grid=(1,),
            in_specs=[
                pl.BlockSpec((Bp, Dp), lambda i: (0, 0)),
                pl.BlockSpec((L, Dp, Dp), lambda i: (0, 0, 0)),
                pl.BlockSpec((L, 1, Dp), lambda i: (0, 0, 0)),
            ],
            out_specs=pl.BlockSpec((Bp, Dp), lambda i: (0, 0)),
        ),
        compiler_params=pltpu.CompilerParams(dimension_semantics=("arbitrary",)),
    )(zp, w_stack, b_stack)
    return out[:B, :D]


def wslinear_forward(x, weight, bias, *, lr_scaler=1.0, extra_gain=1.0):
    """WSLinear.forward: (x * weight_gain) @ W.T + bias * bias_gain (times extra_gain)."""
    B, Din = x.shape
    Dout = weight.shape[0]
    Dip, Dop = _ceil_to(Din, LANE), _ceil_to(Dout, LANE)
    Bp = _ceil_to(max(B, SUBLANE), SUBLANE)
    wg = (lr_scaler / math.sqrt(Din)) * extra_gain
    w_eff = _pad_to(_pad_to((weight * wg).T, 0, Dip), 1, Dop)            # gains folded
    b_eff = _pad_to((bias * (lr_scaler * extra_gain)).reshape(1, -1), 1, Dop)
    xp = _pad_to(_pad_to(x, 1, Dip), 0, Bp)
    out = pl.pallas_call(
        _affine_kernel,
        out_shape=jax.ShapeDtypeStruct((Bp, Dop), jnp.float32),
        grid_spec=pltpu.PrefetchScalarGridSpec(
            num_scalar_prefetch=0,
            grid=(1,),
            in_specs=[
                pl.BlockSpec((Bp, Dip), lambda i: (0, 0)),
                pl.BlockSpec((Dip, Dop), lambda i: (0, 0)),
                pl.BlockSpec((1, Dop), lambda i: (0, 0)),
            ],
            out_specs=pl.BlockSpec((Bp, Dop), lambda i: (0, 0)),
        ),
        compiler_params=pltpu.CompilerParams(dimension_semantics=("arbitrary",)),
    )(xp, w_eff, b_eff)
    return out[:B, :Dout]


def style_conv_forward(x_p, style, weight, bias, noise_scaled, *,
                       padding, demodulate, act_slope=None, eps=1e-8):
    """StyleWSConv.forward on a lane-dense, channel-padded NHWC input.

    x_p          : (B, H, W, Cp) f32, real channels in [:C], padded lanes zero.
    style        : (B, C) raw style vector.
    weight       : (OC, C, KH, KW) conv weight (OIHW, as in the module).
    bias         : (OC,) bias.
    noise_scaled : (B, OC, H, W) noise already times noise_strength, or None.
    Returns (B, OH, OW, OCp) with real channels in [:OC] (padded lanes zero).
    """
    B, H, W, Cp = x_p.shape
    OC, C, KH, KW = weight.shape
    assert Cp % LANE == 0 and C <= Cp
    scale = 1.0 / math.sqrt(C * KH * KW)
    OCp = _ceil_to(OC, LANE)
    OH = H + 2 * padding - KH + 1                     # stride is always 1 in this module
    OW = W + 2 * padding - KW + 1
    Hp, Wp = H + 2 * padding, W + 2 * padding
    Q = (OH - 1) * Wp + OW                            # flat span of valid output pixels
    Qp = _ceil_to(Q, SUBLANE)

    # ---- tiny per-layer / per-batch scalars (plain JAX glue) -----------------
    wn = weight * (scale / jnp.max(jnp.abs(weight), axis=(1, 2, 3), keepdims=True))
    s = style / jnp.max(jnp.abs(style), axis=1, keepdims=True)            # (B, C)
    if demodulate:
        wmod = wn[None] * s[:, None, :, None, None]                        # (B,OC,C,KH,KW)
        demod = jnp.sqrt(jnp.sum(wmod * wmod, axis=(2, 3, 4)) + eps)       # (B, OC)
        cout = 1.0 / demod
    else:
        cout = jnp.ones((B, OC), jnp.float32)
    cin = s * scale               # the second `scale` (F.conv2d(x * self.scale, ...))

    # ---- lane-dense operand packing (gains folded into the resident weight) ---
    w_k = jnp.transpose(wn, (2, 3, 1, 0)).reshape(KH * KW, C, OC)
    w_k = _pad_to(_pad_to(w_k, 1, Cp), 2, OCp)                             # (KK, Cp, OCp)
    cin_p = _pad_to(cin, 1, Cp).reshape(B, Cp, 1)
    cout_p = _pad_to(cout, 1, OCp).reshape(B, 1, OCp)
    bias_p = _pad_to(bias.reshape(1, -1).astype(jnp.float32), 1, OCp).reshape(1, 1, OCp)

    # ---- flattened zero-padded NHWC slab; im2col happens inside the kernel ----
    xf = jnp.pad(x_p, ((0, 0), (padding, padding), (padding, padding), (0, 0)))
    xf = xf.reshape(B, Hp * Wp, Cp)
    xf = _pad_to(xf, 1, Hp * Wp + (Qp - Q))   # headroom so every shifted slice is Qp rows

    inputs = [xf, w_k, cin_p, cout_p, bias_p]
    in_specs = [
        pl.BlockSpec((1, xf.shape[1], Cp), lambda b: (b, 0, 0)),
        pl.BlockSpec((KH * KW, Cp, OCp), lambda b: (0, 0, 0)),
        pl.BlockSpec((1, Cp, 1), lambda b: (b, 0, 0)),
        pl.BlockSpec((1, 1, OCp), lambda b: (b, 0, 0)),
        pl.BlockSpec((1, 1, OCp), lambda b: (0, 0, 0)),
    ]
    has_noise = noise_scaled is not None
    if has_noise:
        n = jnp.transpose(noise_scaled, (0, 2, 3, 1))                      # (B, OH, OW, OC)
        n = _pad_to(_pad_to(n, 3, OCp), 2, Wp).reshape(B, OH * Wp, OCp)
        n = _fit_to(n, 1, Qp)
        inputs.append(n)
        in_specs.append(pl.BlockSpec((1, Qp, OCp), lambda b: (b, 0, 0)))

    out = pl.pallas_call(
        functools.partial(_modconv_kernel, KH=KH, KW=KW, Wp=Wp, Qp=Qp,
                          act_slope=act_slope, has_noise=has_noise),
        out_shape=jax.ShapeDtypeStruct((B, Qp, OCp), jnp.float32),
        grid_spec=pltpu.PrefetchScalarGridSpec(
            num_scalar_prefetch=0,
            grid=(B,),
            in_specs=in_specs,
            out_specs=pl.BlockSpec((1, Qp, OCp), lambda b: (b, 0, 0)),
        ),
        compiler_params=pltpu.CompilerParams(dimension_semantics=("parallel",)),
    )(*inputs)

    # valid output pixels live at flat index h*Wp + w with w < OW
    out = _fit_to(out, 1, OH * Wp).reshape(B, OH, Wp, OCp)[:, :, :OW, :]
    return out


# -------------------------------------------------------- module-level forward glue
def synthesis_layer_forward(p, x_p, w_latent, key, *, act_slope):
    """Synthesis_layer.forward: style affine -> modulated conv (+ fresh noise)."""
    aff = wslinear_forward(w_latent, p["aff_w"], p["aff_b"], lr_scaler=1.0)  # bias_init=1
    B, H, W, _ = x_p.shape
    OC = p["conv_w"].shape[0]
    noise = jax.random.normal(key, (B, OC, H, W), jnp.float32) * p["noise_strength"]
    return style_conv_forward(x_p, aff, p["conv_w"], p["conv_b"], noise,
                              padding=1, demodulate=True, act_slope=act_slope)


def to_rgb_forward(p, x_p, w_latent):
    """ToRGB.forward: affine * gain -> 1x1 modulated conv (no demod) -> LeakyReLU."""
    c_in = p["conv_w"].shape[1]
    gain = 1.0 / math.sqrt(c_in)                         # 1 / (in_channels * 1^2)^0.5
    aff = wslinear_forward(w_latent, p["aff_w"], p["aff_b"],
                           lr_scaler=1.0, extra_gain=gain)
    return style_conv_forward(x_p, aff, p["conv_w"], p["conv_b"], None,
                              padding=0, demodulate=False, act_slope=LEAKY_SLOPE)


def synthesis_block_forward(p, x_p, w_latent, key):
    x_p = _upsample2x(x_p)
    k0, k1 = jax.random.split(key)
    x_p = synthesis_layer_forward(p["layer0"], x_p, w_latent, k0, act_slope=LEAKY_SLOPE)
    x_p = synthesis_layer_forward(p["layer1"], x_p, w_latent, k1, act_slope=LEAKY_SLOPE)
    rgb = to_rgb_forward(p["to_rgb"], x_p, w_latent)
    rgb = _leaky(rgb[..., :3])          # Synthesis_block applies LeakyReLU again to RGB
    return x_p, rgb


def generator_forward(params, z, key):
    B = z.shape[0]
    w = mapping_forward(z, params["map_w"], params["map_b"],
                        lr_scaler=params["lr_scale_factor"])
    # style mixing (host-side randomness, deterministic given `key`)
    key, k_mix, k_cut, k_z2 = jax.random.split(key, 4)
    if float(jax.random.uniform(k_mix, ())) >= params["style_mixing_thresh"]:
        cutoff = int(jax.random.randint(k_cut, (), 0, w.shape[1]))
        z2 = jax.random.normal(k_z2, z.shape, z.dtype)
        w2 = mapping_forward(z2, params["map_w"], params["map_b"],
                             lr_scaler=params["lr_scale_factor"])
        w = w.at[:, cutoff:].set(w2[:, cutoff:])
    # running average of w (torch.lerp side effect) — computed and returned
    w_avg = ((1.0 - params["w_avg_beta"]) * jnp.mean(w, axis=0)
             + params["w_avg_beta"] * params["w_avg"])

    const = jnp.broadcast_to(params["const_input"],
                             (B,) + params["const_input"].shape[1:])       # (B, C4, 4, 4)
    x_p = _pad_to(jnp.transpose(const, (0, 2, 3, 1)),
                  3, _ceil_to(const.shape[1], LANE))                       # NHWC, lane-dense
    key, k_init = jax.random.split(key)
    x_p = synthesis_layer_forward(params["init"], x_p, w, k_init, act_slope=None)

    imgs = jnp.zeros((B, 4, 4, 3), jnp.float32)
    for bp in params["blocks"]:
        key, kb = jax.random.split(key)
        imgs = _upsample2x(imgs)
        x_p, rgb = synthesis_block_forward(bp, x_p, w, kb)
        imgs = imgs + rgb
    imgs = jnp.transpose(imgs, (0, 3, 1, 2))             # back to the module's NCHW layout
    return imgs, w, w_avg


# ------------------------------------------------------------------ parameter init
def init_wslinear_params(key, d_in, d_out, bias_init):
    w = jax.random.normal(key, (d_out, d_in), jnp.float32)    # nn.init.normal_(weight)
    b = jnp.full((d_out,), float(bias_init), jnp.float32)
    return w, b


def init_styleconv_params(key, c_in, c_out, k):
    return {
        "conv_w": jax.random.normal(key, (c_out, c_in, k, k), jnp.float32),
        "conv_b": jnp.zeros((c_out,), jnp.float32),    # module stores (1, OC, 1, 1)
        "noise_strength": jnp.zeros((), jnp.float32),
    }


def init_synthesis_layer_params(key, c_in, c_out, w_dim):
    k_aff, k_conv = jax.random.split(key)
    aff_w, aff_b = init_wslinear_params(k_aff, w_dim, c_in, bias_init=1)
    p = {"aff_w": aff_w, "aff_b": aff_b}
    p.update(init_styleconv_params(k_conv, c_in, c_out, 3))
    return p


def init_to_rgb_params(key, c_in, w_dim):
    k_aff, k_conv = jax.random.split(key)
    aff_w, aff_b = init_wslinear_params(k_aff, w_dim, c_in, bias_init=1)
    p = {"aff_w": aff_w, "aff_b": aff_b}
    p.update(init_styleconv_params(k_conv, c_in, 3, 1))
    return p


def init_generator_params(key, *, output_resolution, z_dim, w_dim, max_channels,
                          channels_multiplier, num_mapping_layers=8,
                          lr_scale_factor=0.01, style_mixing_thresh=0.9,
                          w_avg_beta=0.995):
    steps = int(math.log2(output_resolution))
    ch = {2 ** r: min(max_channels, int(channels_multiplier / 2 ** r))
          for r in range(2, steps + 1)}
    keys = jax.random.split(key, num_mapping_layers + 2 * (steps - 2) + 8)
    ki = iter(keys)
    map_w, map_b = [], []
    for _ in range(num_mapping_layers):
        w_, b_ = init_wslinear_params(next(ki), z_dim, w_dim, bias_init=0)
        map_w.append(w_)
        map_b.append(b_)
    params = {
        "map_w": map_w, "map_b": map_b,
        "lr_scale_factor": lr_scale_factor,
        "style_mixing_thresh": style_mixing_thresh,
        "w_avg_beta": w_avg_beta,
        "w_avg": jnp.zeros((w_dim,), jnp.float32),
        "const_input": jax.random.normal(next(ki), (1, ch[4], 4, 4), jnp.float32),
        "init": init_synthesis_layer_params(next(ki), ch[4], ch[4], w_dim),
        "blocks": [],
    }
    for step in range(3, steps + 1):
        c_in, c_out = ch[2 ** (step - 1)], ch[2 ** step]
        kb0, kb1, kbr = jax.random.split(next(ki), 3)
        params["blocks"].append({
            "layer0": init_synthesis_layer_params(kb0, c_in, c_out, w_dim),
            "layer1": init_synthesis_layer_params(kb1, c_out, c_out, w_dim),
            "to_rgb": init_to_rgb_params(kbr, c_out, w_dim),
        })
    return params


# --------------------------------------------------------------------------- main
if __name__ == "__main__":
    root = jax.random.PRNGKey(0)
    k_params, k_z, k_run, k_chk = jax.random.split(root, 4)

    # small config consistent with the module (defaults would be 256x256 / 512 ch)
    B = 2
    Z_DIM = W_DIM = 64
    OUT_RES = 16               # blocks at 8x8 and 16x16 on top of the 4x4 const input
    params = init_generator_params(
        k_params, output_resolution=OUT_RES, z_dim=Z_DIM, w_dim=W_DIM,
        max_channels=32, channels_multiplier=128)

    # ---- quick self-checks of the Pallas kernels against plain-JAX references ----
    # (a) WSLinear affine
    kx, kconv = jax.random.split(k_chk)
    x_t = jax.random.normal(kx, (B, W_DIM), jnp.float32)
    aw, ab = params["init"]["aff_w"], params["init"]["aff_b"]
    got = wslinear_forward(x_t, aw, ab, lr_scaler=1.0)
    want = (x_t * (1.0 / math.sqrt(W_DIM))) @ aw.T + ab[None, :]
    assert jnp.allclose(got, want, atol=1e-2, rtol=1e-2), "WSLinear kernel mismatch"

    # (b) modulated + demodulated 3x3 conv with noise
    C_T, OC_T, H_T = 4, 8, 16
    kx2, ks2, kw3, kn2 = jax.random.split(kconv, 4)
    x_c = jax.random.normal(kx2, (B, C_T, H_T, H_T), jnp.float32)
    sty = jax.random.normal(ks2, (B, C_T), jnp.float32)
    w_c = jax.random.normal(kw3, (OC_T, C_T, 3, 3), jnp.float32)
    b_c = jax.random.normal(kw3, (OC_T,), jnp.float32) * 0.1
    noi = jax.random.normal(kn2, (B, OC_T, H_T, H_T), jnp.float32) * 0.3
    x_c_p = _pad_to(jnp.transpose(x_c, (0, 2, 3, 1)), 3, LANE)
    got = style_conv_forward(x_c_p, sty, w_c, b_c, noi,
                             padding=1, demodulate=True)[..., :OC_T]
    got = jnp.transpose(got, (0, 3, 1, 2))
    scale = 1.0 / math.sqrt(C_T * 9)
    wn = w_c * (scale / jnp.max(jnp.abs(w_c), axis=(1, 2, 3), keepdims=True))
    s_n = sty / jnp.max(jnp.abs(sty), axis=1, keepdims=True)
    w_b = wn[None] * s_n[:, None, :, None, None]
    dm = jnp.sqrt(jnp.sum(w_b * w_b, axis=(2, 3, 4)) + 1e-8)
    w_b = w_b / dm[:, :, None, None, None]
    want = jnp.concatenate([
        jax.lax.conv_general_dilated(
            x_c[b:b + 1] * scale, w_b[b], (1, 1), [(1, 1), (1, 1)],
            dimension_numbers=("NCHW", "OIHW", "NCHW"),
            precision=jax.lax.Precision.HIGHEST)
        for b in range(B)], axis=0) + b_c.reshape(1, OC_T, 1, 1) + noi
    assert jnp.allclose(got, want, atol=1e-2, rtol=1e-2), "modulated-conv kernel mismatch"

    # ---- full generator forward ----
    z = jax.random.normal(k_z, (B, Z_DIM), jnp.float32)
    imgs, w, w_avg = generator_forward(params, z, k_run)
    imgs, w, w_avg = jax.block_until_ready((imgs, w, w_avg))

    assert imgs.shape == (B, 3, OUT_RES, OUT_RES)
    assert w.shape == (B, W_DIM) and w_avg.shape == (W_DIM,)
    assert bool(jnp.all(jnp.isfinite(imgs))) and bool(jnp.all(jnp.isfinite(w)))
    print("KERNEL_OK")
</pallas_src>

<mosaic_0001>
module attributes {stable_mosaic.version = 11 : i64} {
  func.func @_affine_kernel(%arg0: i32, %arg1: memref<8x128xf32, #tpu.memory_space<vmem>>, %arg2: memref<128x128xf32, #tpu.memory_space<vmem>>, %arg3: memref<1x128xf32, #tpu.memory_space<vmem>>, %arg4: memref<8x128xf32, #tpu.memory_space<vmem>>) attributes {dimension_semantics = [#tpu.dimension_semantics<arbitrary>], iteration_bounds = array<i64: 1>, scalar_prefetch = 0 : i64, scratch_operands = 0 : i64, tpu.core_type = #tpu.core_type<tc>, window_params = [{pipeline_mode = #tpu.pipeline_mode<synchronous>, transform_indices = @transform_0, window_bounds = array<i64: 8, 128>}, {pipeline_mode = #tpu.pipeline_mode<synchronous>, transform_indices = @transform_1, window_bounds = array<i64: 128, 128>}, {pipeline_mode = #tpu.pipeline_mode<synchronous>, transform_indices = @transform_2, window_bounds = array<i64: 1, 128>}, {pipeline_mode = #tpu.pipeline_mode<synchronous>, transform_indices = @transform_3, window_bounds = array<i64: 8, 128>}]} {
    %c0 = arith.constant 0 : index
    %c0_0 = arith.constant 0 : index
    %0 = vector.load %arg1[%c0, %c0_0] : memref<8x128xf32, #tpu.memory_space<vmem>>, vector<8x128xf32>
    %c0_1 = arith.constant 0 : index
    %c0_2 = arith.constant 0 : index
    %1 = vector.load %arg2[%c0_1, %c0_2] : memref<128x128xf32, #tpu.memory_space<vmem>>, vector<128x128xf32>
    %cst = arith.constant dense<0.000000e+00> : vector<8x128xf32>
    %2 = tpu.matmul %0, %1, %cst {dimension_numbers = #tpu.dot_dimension_numbers<[1], [0], [0], [1], [0, 0, 1, 1], [], []>} : vector<8x128xf32>, vector<128x128xf32>, vector<8x128xf32> -> vector<8x128xf32>
    %c0_3 = arith.constant 0 : index
    %c0_4 = arith.constant 0 : index
    %3 = vector.load %arg3[%c0_3, %c0_4] : memref<1x128xf32, #tpu.memory_space<vmem>>, vector<1x128xf32>
    %4 = vector.broadcast %3 : vector<1x128xf32> to vector<8x128xf32>
    %5 = arith.addf %2, %4 : vector<8x128xf32>
    %c0_5 = arith.constant 0 : index
    %c0_6 = arith.constant 0 : index
    %6 = vector.load %arg4[%c0_5, %c0_6] : memref<8x128xf32, #tpu.memory_space<vmem>>, vector<8x128xf32>
    tpu.vector_store %arg4[%c0_5, %c0_6], %5 {strides = array<i32>} : memref<8x128xf32, #tpu.memory_space<vmem>>, vector<8x128xf32>,
    return
  }
  func.func @transform_0(%arg0: i32) -> (i32, i32) {
    %c0_i32 = arith.constant 0 : i32
    %c0_i32_0 = arith.constant 0 : i32
    %c0_i32_1 = arith.constant 0 : i32
    return %c0_i32, %c0_i32_0 : i32, i32
  }
  func.func @transform_1(%arg0: i32) -> (i32, i32) {
    %c0_i32 = arith.constant 0 : i32
    %c0_i32_0 = arith.constant 0 : i32
    %c0_i32_1 = arith.constant 0 : i32
    return %c0_i32, %c0_i32_0 : i32, i32
  }
  func.func @transform_2(%arg0: i32) -> (i32, i32) {
    %c0_i32 = arith.constant 0 : i32
    %c0_i32_0 = arith.constant 0 : i32
    %c0_i32_1 = arith.constant 0 : i32
    return %c0_i32, %c0_i32_0 : i32, i32
  }
  func.func @transform_3(%arg0: i32) -> (i32, i32) {
    %c0_i32 = arith.constant 0 : i32
    %c0_i32_0 = arith.constant 0 : i32
    %c0_i32_1 = arith.constant 0 : i32
    return %c0_i32, %c0_i32_0 : i32, i32
  }
}

</mosaic_0001>

<llo_original>
// kernel: tpu_custom_call.1
$region0: #{tpu_custom_call.1}
  #allocation0 [shape = 'u32[]', space=smem, size = 0x4, offset = 0x4, fixed_abs, tag = 'smem constant byte address 0x4 - core index']
  #allocation1 [shape = 'u32[144,128]{1,0:T(1,128)}', space=vmem, size = 0x12000, scoped, tag = 'internal scratch']
  %s0 = inlined_call_operand.hbm [shape: f32[8,128], index: 0, kind: input, shape index: {}]
  %s1 = inlined_call_operand.hbm [shape: f32[128,128], index: 1, kind: input, shape index: {}]
  %s2 = inlined_call_operand.vmem [shape: f32[1,128], index: 2, kind: input, shape index: {}]
  %s3 = inlined_call_operand.hbm [shape: f32[8,128], index: 3, kind: output, shape index: {}]
  %s4 = sld [smem:[#allocation0]]
  $region30: #{tpu_custom_call.1} parent=0
    _
  %s6 = ssub.s32 1, %s4
  %s7 = scalar_select 0, %s6, %s4
  $region1: #{tpu_custom_call.1} parent=0
    #allocation2 [shape = 'u8[4096]{0}', space=vmem, size = 0x1000, scoped, tag = 'input window, operand 0, single buffered']
    #allocation3 [shape = 's32[1]{0}', space=sflag, size = 0x4, scoped, tag = 'scoped memory for tpu_custom_call.1']
    #allocation4 [shape = 's32[1]{0}', space=sflag, size = 0x4, scoped, tag = 'scoped memory for tpu_custom_call.1']
    #allocation5 [shape = 'u8[65536]{0}', space=vmem, size = 0x10000, scoped, tag = 'input window, operand 1, single buffered']
    #allocation6 [shape = 's32[1]{0}', space=sflag, size = 0x4, scoped, tag = 'scoped memory for tpu_custom_call.1']
    #allocation7 [shape = 'u8[4096]{0}', space=vmem, size = 0x1000, scoped, tag = 'output window, operand 0, single buffered']
    %8 = vsyncpa [#allocation3], 0
    %9 = vsyncpa [#allocation6], 0
    %10 = vsyncpa [#allocation4], 0
    // Predicated region
    $region2: #{tpu_custom_call.1} parent=1 // pred_check
      _
    $region3: #{tpu_custom_call.1} parent=1 // pred_check_branch
      %12 = sbr.rel (0) target = $region5
    $region4: #{tpu_custom_call.1} parent=1 // pred_region
      %s14 = ssub.s32 128, 128
      %15 = vsyncadd [#allocation3], %s14
      %s17 = sshll.u32 [#allocation2], 4
      %s18 = int_to_ptr.vmem [resolvable:$true] %s17
      %20 = dma.hbm_to_vmem [thread:$0]  %s0, 128, %s18, [#allocation3]
    $region5: #{tpu_custom_call.1} parent=1 // pred_fallthru
      _
    // Predicated region
    $region6: #{tpu_custom_call.1} parent=1 // pred_check
      _
    $region7: #{tpu_custom_call.1} parent=1 // pred_check_branch
      %22 = sbr.rel (0) target = $region9
    $region8: #{tpu_custom_call.1} parent=1 // pred_region
      %s24 = ssub.s32 2048, 2048
      %25 = vsyncadd [#allocation6], %s24
      %s26 = sshll.u32 [#allocation5], 4
      %s27 = int_to_ptr.vmem [resolvable:$true] %s26
      %32 = dma.hbm_to_vmem [thread:$0]  %s1, 2048, %s27, [#allocation6], 128, 128, 8
    $region9: #{tpu_custom_call.1} parent=1 // pred_fallthru
      _
    // Predicated region
    $region10: #{tpu_custom_call.1} parent=1 // pred_check
      _
    $region11: #{tpu_custom_call.1} parent=1 // pred_check_branch
      %34 = sbr.rel (0) target = $region13
    $region12: #{tpu_custom_call.1} parent=1 // pred_region
      _
    $region13: #{tpu_custom_call.1} parent=1 // pred_fallthru
      _
    // Predicated region
    $region14: #{tpu_custom_call.1} parent=1 // pred_check
      _
    $region15: #{tpu_custom_call.1} parent=1 // pred_check_branch
      %36 = sbr.rel (0) target = $region17
    $region16: #{tpu_custom_call.1} parent=1 // pred_region
      %37 = dma.done [#allocation3], 128
    $region17: #{tpu_custom_call.1} parent=1 // pred_fallthru
      _
    // Predicated region
    $region18: #{tpu_custom_call.1} parent=1 // pred_check
      _
    $region19: #{tpu_custom_call.1} parent=1 // pred_check_branch
      %39 = sbr.rel (0) target = $region21
    $region20: #{tpu_custom_call.1} parent=1 // pred_region
      %40 = dma.done [#allocation6], 2048
    $region21: #{tpu_custom_call.1} parent=1 // pred_fallthru
      _
    %v41 = vld [vmem:[#allocation2] sm:$0xff]
    %v42 = vld [vmem:[#allocation5] sm:$0xff]
    %v43 = vld [vmem:[#allocation5 + $0x8] sm:$0xff]
    %v44 = vld [vmem:[#allocation5 + $0x10] sm:$0xff]
    %v45 = vld [vmem:[#allocation5 + $0x18] sm:$0xff]
    %v46 = vld [vmem:[#allocation5 + $0x20] sm:$0xff]
    %v47 = vld [vmem:[#allocation5 + $0x28] sm:$0xff]
    %v48 = vld [vmem:[#allocation5 + $0x30] sm:$0xff]
    %v49 = vld [vmem:[#allocation5 + $0x38] sm:$0xff]
    %v50 = vld [vmem:[#allocation5 + $0x40] sm:$0xff]
    %v51 = vld [vmem:[#allocation5 + $0x48] sm:$0xff]
    %v52 = vld [vmem:[#allocation5 + $0x50] sm:$0xff]
    %v53 = vld [vmem:[#allocation5 + $0x58] sm:$0xff]
    %v54 = vld [vmem:[#allocation5 + $0x60] sm:$0xff]
    %v55 = vld [vmem:[#allocation5 + $0x68] sm:$0xff]
    %v56 = vld [vmem:[#allocation5 + $0x70] sm:$0xff]
    %v57 = vld [vmem:[#allocation5 + $0x78] sm:$0xff]
    %v58 = vld [vmem:[%s2] sm:$0x1]
    %v60 = vlaneseq
    %v61 = vshrl.u32 %v60, 7
    %v62 = vsub.s32 0, %v61
    %v63 = vrot.slane %v58, %v62
    %65 = vmatprep.subr.mxu0 0.0
    %66 = vmatpush1.msra.mxu0 %v42
    %67 = vmatprep.subr.mxu0 0.0
    %68 = vmatpush1.msra.mxu0 %v43
    %69 = vmatprep.subr.mxu0 0.0
    %70 = vmatpush1.msra.mxu0 %v44
    %71 = vmatprep.subr.mxu0 0.0
    %72 = vmatpush1.msra.mxu0 %v45
    %73 = vmatprep.subr.mxu0 0.0
    %74 = vmatpush1.msra.mxu0 %v46
    %75 = vmatprep.subr.mxu0 0.0
    %76 = vmatpush1.msra.mxu0 %v47
    %77 = vmatprep.subr.mxu0 0.0
    %78 = vmatpush1.msra.mxu0 %v48
    %79 = vmatprep.subr.mxu0 0.0
    %80 = vmatpush1.msra.mxu0 %v49
    %81 = vmatprep.subr.mxu0 0.0
    %82 = vmatpush1.msra.mxu0 %v50
    %83 = vmatprep.subr.mxu0 0.0
    %84 = vmatpush1.msra.mxu0 %v51
    %85 = vmatprep.subr.mxu0 0.0
    %86 = vmatpush1.msra.mxu0 %v52
    %87 = vmatprep.subr.mxu0 0.0
    %88 = vmatpush1.msra.mxu0 %v53
    %89 = vmatprep.subr.mxu0 0.0
    %90 = vmatpush1.msra.mxu0 %v54
    %91 = vmatprep.subr.mxu0 0.0
    %92 = vmatpush1.msra.mxu0 %v55
    %93 = vmatprep.subr.mxu0 0.0
    %94 = vmatpush1.msra.mxu0 %v56
    %95 = vmatprep.subr.mxu0 0.0
    %96 = vmatpush1.msra.mxu0 %v57
    %97 = vmatprep.subr.mxu0 0.0
    %98 = vmatpush1.msra.mxu0 0.0
    %99 = vmatprep.subr.mxu0 0.0
    %100 = vmatpush1.msra.mxu0 0.0
    %101 = vmatprep.subr.mxu0 0.0
    %102 = vmatpush1.msra.mxu0 0.0
    %103 = vmatprep.subr.mxu0 0.0
    %104 = vmatpush1.msra.mxu0 0.0
    %105 = vmatprep.subr.mxu0 0.0
    %106 = vmatpush1.msra.mxu0 0.0
    %107 = vmatprep.subr.mxu0 0.0
    %108 = vmatpush1.msra.mxu0 0.0
    %109 = vmatprep.subr.mxu0 0.0
    %110 = vmatpush1.msra.mxu0 0.0
    %111 = vmatprep.subr.mxu0 0.0
    %112 = vmatpush1.msra.mxu0 0.0
    %113 = vmatprep.subr.mxu0 0.0
    %114 = vmatpush1.msra.mxu0 0.0
    %115 = vmatprep.subr.mxu0 0.0
    %116 = vmatpush1.msra.mxu0 0.0
    %117 = vmatprep.subr.mxu0 0.0
    %118 = vmatpush1.msra.mxu0 0.0
    %119 = vmatprep.subr.mxu0 0.0
    %120 = vmatpush1.msra.mxu0 0.0
    %121 = vmatprep.subr.mxu0 0.0
    %122 = vmatpush1.msra.mxu0 0.0
    %123 = vmatprep.subr.mxu0 0.0
    %124 = vmatpush1.msra.mxu0 0.0
    %125 = vmatprep.subr.mxu0 0.0
    %126 = vmatpush1.msra.mxu0 0.0
    %127 = vmatprep.subr.mxu0 0.0
    %128 = vmatpush1.msra.mxu0 0.0
    %129 = vmatprep.mubr.f32.mxu0 0.0
    %130 = vmatmul.mubr.f32.gmra.mrb[0].mxu0 %v41
    %v131 = vpop.f32.mrb[0].mxu0
    %v132 = vadd.f32 %v63, %v131
    %v133 = vpop.f32.mrb[0].mxu0
    %134 = vdwg.mxu0
    %135 = vst [vmem:[#allocation7] sm:$0xff] %v132
    // Predicated region
    $region22: #{tpu_custom_call.1} parent=1 // pred_check
      _
    $region23: #{tpu_custom_call.1} parent=1 // pred_check_branch
      %137 = sbr.rel (0) target = $region25
    $region24: #{tpu_custom_call.1} parent=1 // pred_region
      %s139 = ssub.s32 128, 128
      %140 = vsyncadd [#allocation4], %s139
      %s142 = sshll.u32 [#allocation7], 4
      %s143 = int_to_ptr.vmem [resolvable:$true] %s142
      %145 = dma.vmem_to_hbm [thread:$0]  %s143, 128, %s3, [#allocation4]
    $region25: #{tpu_custom_call.1} parent=1 // pred_fallthru
      _
    // Predicated region
    $region26: #{tpu_custom_call.1} parent=1 // pred_check
      _
    $region27: #{tpu_custom_call.1} parent=1 // pred_check_branch
      %147 = sbr.rel (0) target = $region29
    $region28: #{tpu_custom_call.1} parent=1 // pred_region
      %148 = dma.done [#allocation4], 128
    $region29: #{tpu_custom_call.1} parent=1 // pred_fallthru
      _
    %149 = vsyncpa [#allocation3], 1
    %150 = vsyncpa [#allocation6], 1
    %151 = vsyncpa [#allocation4], 1

</llo_original>
